<compile_context>
chip_gen: v7x
topology: tpu7x:2x2x1
jax: 0.10.0
libtpu: 0.0.40
codegen_flags: <defaults>
</compile_context>

<pallas_src>
import functools
import math

import jax
import jax.numpy as jnp
from jax.experimental import pallas as pl
from jax.experimental.pallas import tpu as pltpu


def _distill_kl_kernel(ys_ref, yt_ref, out_ref, *, inv_T: float, tile_b: int,
                       rows_total: int, ragged: bool):
    # Load one (TILE_B, C) tile of each logits array and upcast to f32.
    ys = ys_ref[...].astype(jnp.float32)                 # [TILE_B, C]
    yt = yt_ref[...].astype(jnp.float32)                 # [TILE_B, C]

    if ragged:
        # Mask out-of-range rows to zero LOGITS (identical for student and
        # teacher => exactly zero per-row KL; also neutralizes any garbage
        # read by the clamped tail-block DMA).
        start = pl.program_id(0) * tile_b
        row = jax.lax.broadcasted_iota(jnp.int32, (tile_b, 1), 0)
        valid = row < (rows_total - start)                # [TILE_B, 1] bool
        ys = jnp.where(valid, ys, 0.0)
        yt = jnp.where(valid, yt, 0.0)

    ys = ys * inv_T
    yt = yt * inv_T

    # Numerically stable shifted logits (class axis = lane axis).
    s_shift = ys - jnp.max(ys, axis=-1, keepdims=True)
    t_shift = yt - jnp.max(yt, axis=-1, keepdims=True)

    # Exactly 2 exps per element; logs / reciprocal are per-row only.
    e_s = jnp.exp(s_shift)
    e_t = jnp.exp(t_shift)
    z_s = jnp.sum(e_s, axis=-1, keepdims=True)            # [TILE_B, 1]
    z_t = jnp.sum(e_t, axis=-1, keepdims=True)            # [TILE_B, 1]

    p_t = e_t * (1.0 / z_t)                                # exact reciprocal
    log_ratio = jnp.log(z_s) - jnp.log(z_t)                # [TILE_B, 1]

    # p_t * (log p_t - log p_s), with the bracket folded so log_p_s / log_p_t
    # tiles are never materialized.
    contrib = p_t * ((t_shift - s_shift) + log_ratio)      # [TILE_B, C]

    # Partial reduction to an (8, C) sublane-aligned slab: group rows by their
    # sublane position and add groups together (pure VALU adds, no XLU
    # cross-sublane reduce, unmasked aligned store).
    groups = tile_b // 8
    out_ref[...] = jnp.sum(contrib.reshape(groups, 8, contrib.shape[-1]), axis=0)


def _vmem_plan():
    """(vmem_limit_bytes_or_None, tiling_budget_bytes) per TPU generation."""
    try:
        kind = jax.devices()[0].device_kind.lower()
    except Exception:
        kind = ""
    if "v7" in kind or "tpu7" in kind:
        # v7x: 64 MiB VMEM per TensorCore -> keep the footprint well under it.
        return 48 * (1 << 20), 36 * (1 << 20)
    if any(t in kind for t in ("v4", "v5", "v6")):
        # v4/v5e/v5p/v6e: 128 MiB physical VMEM -> bigger tiles amortize the
        # ~0.35 us per-grid-step overhead.
        return 96 * (1 << 20), 72 * (1 << 20)
    # Unknown chip: rely on the scoped default, size tiles conservatively.
    return None, 20 * (1 << 20)


def _pick_tile_b(B: int, C: int, dtype, budget_bytes: int) -> int:
    """Largest sublane-rounded batch tile whose estimated VMEM footprint
    (2 inputs x 2 pipeline buffers + ~5 live full-tile f32 temporaries) fits
    the tiling budget.  No artificial row cap."""
    sublane = 16 if jnp.dtype(dtype) == jnp.dtype(jnp.bfloat16) else 8
    in_item = jnp.dtype(dtype).itemsize
    bytes_per_row = 4 * C * in_item + 5 * C * 4
    rows = budget_bytes // max(1, bytes_per_row)
    rows = max(sublane, (rows // sublane) * sublane)
    b_rounded = math.ceil(B / sublane) * sublane     # don't over-pad small B
    return int(min(rows, b_rounded))


def distill_kl(y_s: jax.Array, y_t: jax.Array, T: float,
               tile_b: int | None = None) -> jax.Array:
    """DistillKL forward. y_s, y_t: [B, C] logits (f32 or bf16). Scalar f32 loss."""
    assert y_s.shape == y_t.shape and y_s.ndim == 2
    assert y_s.dtype == y_t.dtype
    B, C = y_s.shape

    vmem_limit, budget = _vmem_plan()
    if tile_b is None:
        tile_b = _pick_tile_b(B, C, y_s.dtype, budget)
    sublane = 16 if jnp.dtype(y_s.dtype) == jnp.dtype(jnp.bfloat16) else 8
    assert tile_b % sublane == 0, (tile_b, sublane)

    num_tiles = math.ceil(B / tile_b)
    ragged = (B % tile_b) != 0

    kernel = functools.partial(
        _distill_kl_kernel,
        inv_T=1.0 / float(T), tile_b=tile_b, rows_total=B, ragged=ragged)

    cp_kwargs = dict(dimension_semantics=("parallel",))
    if vmem_limit is not None:
        cp_kwargs["vmem_limit_bytes"] = vmem_limit

    partials = pl.pallas_call(
        kernel,
        out_shape=jax.ShapeDtypeStruct((num_tiles * 8, C), jnp.float32),
        grid=(num_tiles,),
        in_specs=[
            pl.BlockSpec((tile_b, C), lambda i: (i, 0)),
            pl.BlockSpec((tile_b, C), lambda i: (i, 0)),
        ],
        out_specs=pl.BlockSpec((8, C), lambda i: (i, 0)),
        compiler_params=pltpu.CompilerParams(**cp_kwargs),
    )(y_s, y_t)

    # Tiny final reduction + batchmean + T^2 scaling outside the kernel.
    return jnp.sum(partials) * (float(T) * float(T) / B)


def _reference(y_s, y_t, T):
    ys = y_s.astype(jnp.float32)
    yt = y_t.astype(jnp.float32)
    log_p_s = jax.nn.log_softmax(ys / T, axis=1)
    p_t = jax.nn.softmax(yt / T, axis=1)
    log_p_t = jax.nn.log_softmax(yt / T, axis=1)
    return jnp.sum(p_t * (log_p_t - log_p_s)) / y_s.shape[0] * T * T


if __name__ == "__main__":
    key = jax.random.PRNGKey(0)
    T = 4.0
    k1, k2, k3, k4, k5, k6 = jax.random.split(key, 6)

    # Case 1: toy shape matching the module spec (batch=8, classes=32), f32,
    # single tile, no tail masking.
    B1, C1 = 8, 32
    y_s1 = jax.random.normal(k1, (B1, C1), dtype=jnp.float32)
    y_t1 = jax.random.normal(k2, (B1, C1), dtype=jnp.float32)
    loss1 = distill_kl(y_s1, y_t1, T)
    jax.block_until_ready(loss1)
    ref1 = _reference(y_s1, y_t1, T)
    assert jnp.allclose(loss1, ref1, rtol=1e-5, atol=1e-5), (loss1, ref1)

    # Case 2: ragged batch (exercises the in-kernel tail-row masking, no pad).
    B2, C2 = 13, 256
    y_s2 = jax.random.normal(k3, (B2, C2), dtype=jnp.float32)
    y_t2 = jax.random.normal(k4, (B2, C2), dtype=jnp.float32)
    loss2 = distill_kl(y_s2, y_t2, T)
    jax.block_until_ready(loss2)
    ref2 = _reference(y_s2, y_t2, T)
    assert jnp.allclose(loss2, ref2, rtol=1e-5, atol=1e-5), (loss2, ref2)

    # Case 3: multi-tile ragged grid (tile override) — exercises the parallel
    # batch-tile axis, aligned (8, C) partial writebacks and tail masking.
    B3, C3 = 40, 128
    y_s3 = jax.random.normal(k5, (B3, C3), dtype=jnp.float32)
    y_t3 = jax.random.normal(k6, (B3, C3), dtype=jnp.float32)
    loss3 = distill_kl(y_s3, y_t3, T, tile_b=16)
    jax.block_until_ready(loss3)
    ref3 = _reference(y_s3, y_t3, T)
    assert jnp.allclose(loss3, ref3, rtol=1e-5, atol=1e-5), (loss3, ref3)

    print("KERNEL_OK")
</pallas_src>

<mosaic_0001>
module attributes {stable_mosaic.version = 11 : i64} {
  func.func @_distill_kl_kernel(%arg0: i32, %arg1: memref<8x32xf32, #tpu.memory_space<vmem>>, %arg2: memref<8x32xf32, #tpu.memory_space<vmem>>, %arg3: memref<8x32xf32, #tpu.memory_space<vmem>>) attributes {dimension_semantics = [#tpu.dimension_semantics<parallel>], iteration_bounds = array<i64: 1>, scalar_prefetch = 0 : i64, scratch_operands = 0 : i64, tpu.core_type = #tpu.core_type<tc>, window_params = [{transform_indices = @transform_0, window_bounds = array<i64: 8, 32>}, {transform_indices = @transform_1, window_bounds = array<i64: 8, 32>}, {transform_indices = @transform_2, window_bounds = array<i64: 8, 32>}]} {
    %c0 = arith.constant 0 : index
    %c0_0 = arith.constant 0 : index
    %0 = vector.load %arg1[%c0, %c0_0] : memref<8x32xf32, #tpu.memory_space<vmem>>, vector<8x32xf32>
    %c0_1 = arith.constant 0 : index
    %c0_2 = arith.constant 0 : index
    %1 = vector.load %arg2[%c0_1, %c0_2] : memref<8x32xf32, #tpu.memory_space<vmem>>, vector<8x32xf32>
    %cst = arith.constant 2.500000e-01 : f32
    %2 = vector.broadcast %cst : f32 to vector<8x32xf32>
    %3 = arith.mulf %0, %2 : vector<8x32xf32>
    %cst_3 = arith.constant 2.500000e-01 : f32
    %4 = vector.broadcast %cst_3 : f32 to vector<8x32xf32>
    %5 = arith.mulf %1, %4 : vector<8x32xf32>
    %cst_4 = arith.constant dense<0xFF800000> : vector<8xf32>
    %6 = vector.multi_reduction <maximumf>, %3, %cst_4 [1] : vector<8x32xf32> to vector<8xf32>
    %7 = vector.shape_cast %6 : vector<8xf32> to vector<8x1xf32>
    %8 = vector.broadcast %7 : vector<8x1xf32> to vector<8x32xf32>
    %9 = arith.subf %3, %8 : vector<8x32xf32>
    %cst_5 = arith.constant dense<0xFF800000> : vector<8xf32>
    %10 = vector.multi_reduction <maximumf>, %5, %cst_5 [1] : vector<8x32xf32> to vector<8xf32>
    %11 = vector.shape_cast %10 : vector<8xf32> to vector<8x1xf32>
    %12 = vector.broadcast %11 : vector<8x1xf32> to vector<8x32xf32>
    %13 = arith.subf %5, %12 : vector<8x32xf32>
    %14 = math.exp %9 : vector<8x32xf32>
    %15 = math.exp %13 : vector<8x32xf32>
    %cst_6 = arith.constant dense<0.000000e+00> : vector<8xf32>
    %16 = vector.multi_reduction <add>, %14, %cst_6 [1] : vector<8x32xf32> to vector<8xf32>
    %17 = vector.shape_cast %16 : vector<8xf32> to vector<8x1xf32>
    %cst_7 = arith.constant dense<0.000000e+00> : vector<8xf32>
    %18 = vector.multi_reduction <add>, %15, %cst_7 [1] : vector<8x32xf32> to vector<8xf32>
    %19 = vector.shape_cast %18 : vector<8xf32> to vector<8x1xf32>
    %cst_8 = arith.constant 1.000000e+00 : f32
    %20 = vector.broadcast %cst_8 : f32 to vector<8x1xf32>
    %21 = arith.divf %20, %19 : vector<8x1xf32>
    %22 = vector.broadcast %21 : vector<8x1xf32> to vector<8x32xf32>
    %23 = arith.mulf %15, %22 : vector<8x32xf32>
    %24 = math.log %17 : vector<8x1xf32>
    %25 = math.log %19 : vector<8x1xf32>
    %26 = arith.subf %24, %25 : vector<8x1xf32>
    %27 = arith.subf %13, %9 : vector<8x32xf32>
    %28 = vector.broadcast %26 : vector<8x1xf32> to vector<8x32xf32>
    %29 = arith.addf %27, %28 : vector<8x32xf32>
    %30 = arith.mulf %23, %29 : vector<8x32xf32>
    %31 = vector.shape_cast %30 : vector<8x32xf32> to vector<1x8x32xf32>
    %cst_9 = arith.constant dense<0.000000e+00> : vector<8x32xf32>
    %32 = vector.multi_reduction <add>, %31, %cst_9 [0] : vector<1x8x32xf32> to vector<8x32xf32>
    %c0_10 = arith.constant 0 : index
    %c0_11 = arith.constant 0 : index
    %33 = vector.load %arg3[%c0_10, %c0_11] : memref<8x32xf32, #tpu.memory_space<vmem>>, vector<8x32xf32>
    tpu.vector_store %arg3[%c0_10, %c0_11], %32 {strides = array<i32>} : memref<8x32xf32, #tpu.memory_space<vmem>>, vector<8x32xf32>,
    return
  }
  func.func @transform_0(%arg0: i32) -> (i32, i32) {
    %c0_i32 = arith.constant 0 : i32
    %c0_i32_0 = arith.constant 0 : i32
    return %arg0, %c0_i32 : i32, i32
  }
  func.func @transform_1(%arg0: i32) -> (i32, i32) {
    %c0_i32 = arith.constant 0 : i32
    %c0_i32_0 = arith.constant 0 : i32
    return %arg0, %c0_i32 : i32, i32
  }
  func.func @transform_2(%arg0: i32) -> (i32, i32) {
    %c0_i32 = arith.constant 0 : i32
    %c0_i32_0 = arith.constant 0 : i32
    return %arg0, %c0_i32 : i32, i32
  }
}

</mosaic_0001>

<llo_original>
// kernel: tpu_custom_call.1
$region0: #{tpu_custom_call.1}
  #allocation0 [shape = 'u32[]', space=smem, size = 0x4, offset = 0x4, fixed_abs, tag = 'smem constant byte address 0x4 - core index']
  #allocation1 [shape = 'u32[144,128]{1,0:T(1,128)}', space=vmem, size = 0x12000, scoped, tag = 'internal scratch']
  %s0 = inlined_call_operand.hbm [shape: f32[8,32], index: 0, kind: input, shape index: {}]
  %s1 = inlined_call_operand.hbm [shape: f32[8,32], index: 1, kind: input, shape index: {}]
  %s2 = inlined_call_operand.hbm [shape: f32[8,32], index: 2, kind: output, shape index: {}]
  %s3 = sld [smem:[#allocation0]]
  $region26: #{tpu_custom_call.1} parent=0
    _
  %s5 = ssub.s32 1, %s3
  %s6 = scalar_select 0, %s5, %s3
  $region1: #{tpu_custom_call.1} parent=0
    #allocation2 [shape = 'u8[4096]{0}', space=vmem, size = 0x1000, scoped, tag = 'input window, operand 0, single buffered']
    #allocation3 [shape = 's32[1]{0}', space=sflag, size = 0x4, scoped, tag = 'scoped memory for tpu_custom_call.1']
    #allocation4 [shape = 's32[1]{0}', space=sflag, size = 0x4, scoped, tag = 'scoped memory for tpu_custom_call.1']
    #allocation5 [shape = 'u8[4096]{0}', space=vmem, size = 0x1000, scoped, tag = 'input window, operand 1, single buffered']
    #allocation6 [shape = 's32[1]{0}', space=sflag, size = 0x4, scoped, tag = 'scoped memory for tpu_custom_call.1']
    #allocation7 [shape = 'u8[4096]{0}', space=vmem, size = 0x1000, scoped, tag = 'output window, operand 0, single buffered']
    %7 = vsyncpa [#allocation3], 0
    %8 = vsyncpa [#allocation6], 0
    %9 = vsyncpa [#allocation4], 0
    // Predicated region
    $region2: #{tpu_custom_call.1} parent=1 // pred_check
      _
    $region3: #{tpu_custom_call.1} parent=1 // pred_check_branch
      %11 = sbr.rel (0) target = $region5
    $region4: #{tpu_custom_call.1} parent=1 // pred_region
      %s13 = ssub.s32 128, 128
      %14 = vsyncadd [#allocation3], %s13
      %s16 = sshll.u32 [#allocation2], 4
      %s17 = int_to_ptr.vmem [resolvable:$true] %s16
      %19 = dma.hbm_to_vmem [thread:$0]  %s0, 128, %s17, [#allocation3]
    $region5: #{tpu_custom_call.1} parent=1 // pred_fallthru
      _
    // Predicated region
    $region6: #{tpu_custom_call.1} parent=1 // pred_check
      _
    $region7: #{tpu_custom_call.1} parent=1 // pred_check_branch
      %21 = sbr.rel (0) target = $region9
    $region8: #{tpu_custom_call.1} parent=1 // pred_region
      %s23 = ssub.s32 128, 128
      %24 = vsyncadd [#allocation6], %s23
      %s26 = sshll.u32 [#allocation5], 4
      %s27 = int_to_ptr.vmem [resolvable:$true] %s26
      %29 = dma.hbm_to_vmem [thread:$0]  %s1, 128, %s27, [#allocation6]
    $region9: #{tpu_custom_call.1} parent=1 // pred_fallthru
      _
    // Predicated region
    $region10: #{tpu_custom_call.1} parent=1 // pred_check
      _
    $region11: #{tpu_custom_call.1} parent=1 // pred_check_branch
      %31 = sbr.rel (0) target = $region13
    $region12: #{tpu_custom_call.1} parent=1 // pred_region
      %32 = dma.done [#allocation3], 128
    $region13: #{tpu_custom_call.1} parent=1 // pred_fallthru
      _
    // Predicated region
    $region14: #{tpu_custom_call.1} parent=1 // pred_check
      _
    $region15: #{tpu_custom_call.1} parent=1 // pred_check_branch
      %34 = sbr.rel (0) target = $region17
    $region16: #{tpu_custom_call.1} parent=1 // pred_region
      %35 = dma.done [#allocation6], 128
    $region17: #{tpu_custom_call.1} parent=1 // pred_fallthru
      _
    %v36 = vld [vmem:[#allocation2] sm:$0xff]
    %v37 = vld [vmem:[#allocation5] sm:$0xff]
    %v38 = vmul.f32 %v36, 0.25
    %v39 = vmul.f32 %v37, 0.25
    %vm40 = vcmask 261120
    %v41 = vsel %vm40, %v38, -inf
    %42 = vmax.xlane.f32.xlu0 %v41
    %v43 = vpop.xlane.xlu0 %42
    %v44 = vsub.f32 %v38, %v43
    %v45 = vsel %vm40, %v39, -inf
    %46 = vmax.xlane.f32.xlu0 %v45
    %v47 = vpop.xlane.xlu0 %46
    %v48 = vsub.f32 %v39, %v47
    %v49 = vmul.f32 %v44, 1.442695
    %v50 = vpow.pop %v49
    %v51 = vmul.f32 %v48, 1.442695
    %v52 = vpow.pop %v51
    %v53 = vsel %vm40, %v50, 0.0
    %54 = vadd.xlane.f32.xlu0 %v53
    %v55 = vpop.xlane.xlu0 %54
    %v56 = vsel %vm40, %v52, 0.0
    %57 = vadd.xlane.f32.xlu0 %v56
    %v58 = vpop.xlane.xlu0 %57
    %v59 = vrcp.pop %v58
    %v60 = vmul.f32 1.0, %v59
    %v61 = vmul.f32 %v52, %v60
    %v62 = vlog2.pop %v55
    %v63 = vmul.f32 %v62, 0.6931472
    %v64 = vlog2.pop %v58
    %v65 = vmul.f32 %v64, 0.6931472
    %v66 = vsub.f32 %v63, %v65
    %v67 = vsub.f32 %v48, %v44
    %v68 = vadd.f32 %v67, %v66
    %v69 = vmul.f32 %v61, %v68
    %v70 = vadd.f32 %v69, 0.0
    %71 = vst.msk [vmem:[#allocation7] sm:$0xff] %vm40, %v70
    // Predicated region
    $region18: #{tpu_custom_call.1} parent=1 // pred_check
      _
    $region19: #{tpu_custom_call.1} parent=1 // pred_check_branch
      %73 = sbr.rel (0) target = $region21
    $region20: #{tpu_custom_call.1} parent=1 // pred_region
      %s75 = ssub.s32 128, 128
      %76 = vsyncadd [#allocation4], %s75
      %s78 = sshll.u32 [#allocation7], 4
      %s79 = int_to_ptr.vmem [resolvable:$true] %s78
      %81 = dma.vmem_to_hbm [thread:$0]  %s79, 128, %s2, [#allocation4]
    $region21: #{tpu_custom_call.1} parent=1 // pred_fallthru
      _
    // Predicated region
    $region22: #{tpu_custom_call.1} parent=1 // pred_check
      _
    $region23: #{tpu_custom_call.1} parent=1 // pred_check_branch
      %83 = sbr.rel (0) target = $region25
    $region24: #{tpu_custom_call.1} parent=1 // pred_region
      %84 = dma.done [#allocation4], 128
    $region25: #{tpu_custom_call.1} parent=1 // pred_fallthru
      _
    %85 = vsyncpa [#allocation3], 1
    %86 = vsyncpa [#allocation6], 1
    %87 = vsyncpa [#allocation4], 1

</llo_original>
